<compile_context>
chip_gen: v5e
topology: v5e:2x2
jax: 0.10.0
libtpu: 0.0.40
codegen_flags: <defaults>
</compile_context>

<pallas_src>
import functools

import jax
import jax.numpy as jnp
from jax.experimental import pallas as pl
from jax.experimental.pallas import tpu as pltpu

LANES = 128
SUBLANES = 8
MAX_BLOCK_ROWS = 4096                 # rows of 128 lanes per step: 2 MiB f32 per input
VMEM_LIMIT_BYTES = 40 * 1024 * 1024   # inputs (2x2x2 MiB) + elementwise temporaries


def _bce_dice_kernel(x_ref, t_ref, out_ref, *, tile_rows, rows_valid, need_mask):
    """One grid step: (bt, tile_rows, 128) logits/targets -> (bt, 3, 128) partials.

    out_ref lanes hold, per sample:
      [:, 0, :] sum of stable BCE-with-logits terms
      [:, 1, :] sum of sigmoid(x) * t
      [:, 2, :] sum of sigmoid(x) + t
    The output block index is constant along the chunk axis, so the block itself is
    the (VMEM-resident) accumulator.
    """
    c = pl.program_id(1)

    @pl.when(c == 0)
    def _():
        out_ref[...] = jnp.zeros_like(out_ref)

    x = x_ref[...].astype(jnp.float32)      # (bt, tile_rows, 128)
    t = t_ref[...].astype(jnp.float32)

    if need_mask:
        # Last chunk may extend past the valid rows: neutralize the inputs BEFORE any
        # math (x=-1e4 -> exp underflows to exactly 0, t=0), so every partial gets an
        # exact-zero contribution and garbage rows cannot create NaN/Inf.
        row = c * tile_rows + jax.lax.broadcasted_iota(jnp.int32, x.shape, 1)
        valid = row < rows_valid
        x = jnp.where(valid, x, -1e4)
        t = jnp.where(valid, t, 0.0)

    # Numerically stable BCE-with-logits; exp(-|x|) and 1+exp(-|x|) are shared between
    # the softplus term and the sigmoid.
    e = jnp.exp(-jnp.abs(x))
    one_plus_e = 1.0 + e
    loss = jnp.maximum(x, 0.0) - x * t + jnp.log(one_plus_e)
    inv = 1.0 / one_plus_e                  # sigmoid(|x|)
    p = jnp.where(x >= 0.0, inv, e * inv)   # sigmoid(x), stable for both signs

    bt = x.shape[0]

    def row_sum(v):
        # (bt, tile_rows, 128) -> (bt, 128): tile_rows//8 vreg adds on the VPU,
        # then a single 8->1 sublane reduce (XLU slot, otherwise idle here).
        v = v.reshape(bt, tile_rows // SUBLANES, SUBLANES, LANES)
        return jnp.sum(jnp.sum(v, axis=1), axis=1)

    part = jnp.stack([row_sum(loss), row_sum(p * t), row_sum(p + t)], axis=1)
    out_ref[...] += part                    # (bt, 3, 128) resident accumulator


@jax.jit
def bce_dice_loss(logits, targets):
    assert logits.shape == targets.shape
    N = logits.shape[0]
    P = logits.size // N                     # true per-sample element count

    x = logits.reshape(N, P)
    t = targets.reshape(N, P)

    # Pad each flattened sample to a multiple of 8*128 so rows tile as (8, 128).
    # Pad values (logit -1e4, target 0) contribute exactly zero to every partial, so
    # the pad needs no masking.  Free (no copy) for typical C*H*W.
    unit = SUBLANES * LANES
    if P % unit != 0:
        pad = unit - P % unit
        x = jnp.pad(x, ((0, 0), (0, pad)), constant_values=-1e4)
        t = jnp.pad(t, ((0, 0), (0, pad)), constant_values=0)
    R = x.shape[1] // LANES                  # rows per sample, multiple of 8
    x3 = x.reshape(N, R, LANES)
    t3 = t.reshape(N, R, LANES)

    if R <= MAX_BLOCK_ROWS:
        # Whole sample fits in one block: pack multiple samples per grid step to
        # amortize the fixed per-step pipeline cost.
        tile_rows = R
        cap = max(1, MAX_BLOCK_ROWS // R)
        bt = 1
        for d in range(1, N + 1):
            if N % d == 0 and d <= cap:
                bt = d
    else:
        tile_rows = MAX_BLOCK_ROWS
        bt = 1
    n_chunks = pl.cdiv(R, tile_rows)
    need_mask = (n_chunks * tile_rows != R)

    kernel = functools.partial(
        _bce_dice_kernel,
        tile_rows=tile_rows, rows_valid=R, need_mask=need_mask)

    in_spec = pl.BlockSpec((bt, tile_rows, LANES), lambda nb, c: (nb, c, 0))
    out_spec = pl.BlockSpec((bt, 3, LANES), lambda nb, c: (nb, 0, 0))

    partials = pl.pallas_call(
        kernel,
        out_shape=jax.ShapeDtypeStruct((N, 3, LANES), jnp.float32),
        grid_spec=pltpu.PrefetchScalarGridSpec(
            num_scalar_prefetch=0,
            grid=(N // bt, n_chunks),
            in_specs=[in_spec, in_spec],
            out_specs=out_spec,
        ),
        compiler_params=pltpu.CompilerParams(
            dimension_semantics=("parallel", "arbitrary"),
            vmem_limit_bytes=VMEM_LIMIT_BYTES),
    )(x3, t3)

    # Tiny O(N*128) epilogue in plain JAX: cross-lane reduce + bce/dice combine.
    sums = jnp.sum(partials, axis=-1)        # (N, 3)
    bce_sum, pt_sum, p_plus_t_sum = sums[:, 0], sums[:, 1], sums[:, 2]
    smooth = 1e-5
    bce = jnp.sum(bce_sum) / float(N * P)
    dice_per_sample = (2.0 * pt_sum + smooth) / (p_plus_t_sum + smooth)
    dice = 1.0 - jnp.sum(dice_per_sample) / N
    return 0.5 * bce + 0.5 * dice


def _reference(logits, targets):
    x = logits.astype(jnp.float32)
    t = targets.astype(jnp.float32)
    bce = jnp.mean(jnp.maximum(x, 0.0) - x * t + jnp.log1p(jnp.exp(-jnp.abs(x))))
    n = x.shape[0]
    p = jax.nn.sigmoid(x).reshape(n, -1)
    tf = t.reshape(n, -1)
    smooth = 1e-5
    inter = jnp.sum(p * tf, axis=1)
    dice = (2.0 * inter + smooth) / (jnp.sum(p, axis=1) + jnp.sum(tf, axis=1) + smooth)
    dice = 1.0 - jnp.sum(dice) / n
    return 0.5 * bce + 0.5 * dice


if __name__ == "__main__":
    key = jax.random.PRNGKey(0)
    k1, k2 = jax.random.split(key)
    # NCHW like the PyTorch module would receive.
    shape = (2, 4, 16, 16)
    logits = jax.random.normal(k1, shape, dtype=jnp.float32) * 2.0
    targets = (jax.random.uniform(k2, shape) > 0.5).astype(jnp.float32)

    loss = bce_dice_loss(logits, targets)
    loss = jax.block_until_ready(loss)

    ref = _reference(logits, targets)
    assert jnp.allclose(loss, ref, rtol=1e-5, atol=1e-6), (loss, ref)
    print("KERNEL_OK")
</pallas_src>

<mosaic_0001>
module attributes {stable_mosaic.version = 11 : i64} {
  func.func @_bce_dice_kernel(%arg0: i32, %arg1: i32, %arg2: memref<2x8x128xf32, #tpu.memory_space<vmem>>, %arg3: memref<2x8x128xf32, #tpu.memory_space<vmem>>, %arg4: memref<2x3x128xf32, #tpu.memory_space<vmem>>) attributes {dimension_semantics = [#tpu.dimension_semantics<parallel>, #tpu.dimension_semantics<arbitrary>], iteration_bounds = array<i64: 1, 1>, scalar_prefetch = 0 : i64, scratch_operands = 0 : i64, tpu.core_type = #tpu.core_type<tc>, window_params = [{transform_indices = @transform_0, window_bounds = array<i64: 2, 8, 128>}, {transform_indices = @transform_1, window_bounds = array<i64: 2, 8, 128>}, {transform_indices = @transform_2, window_bounds = array<i64: 2, 3, 128>}]} {
    %c0_i32 = arith.constant 0 : i32
    %0 = arith.cmpi eq, %arg1, %c0_i32 : i32
    %1 = arith.extui %0 : i1 to i32
    %c0_i32_0 = arith.constant 0 : i32
    %2 = arith.cmpi ne, %1, %c0_i32_0 : i32
    scf.if %2 {
      %cst_22 = arith.constant 0.000000e+00 : f32
      %41 = vector.broadcast %cst_22 : f32 to vector<2x3x128xf32>
      %c0_23 = arith.constant 0 : index
      %c0_24 = arith.constant 0 : index
      %c0_25 = arith.constant 0 : index
      %42 = vector.load %arg4[%c0_23, %c0_24, %c0_25] : memref<2x3x128xf32, #tpu.memory_space<vmem>>, vector<2x3x128xf32>
      tpu.vector_store %arg4[%c0_23, %c0_24, %c0_25], %41 {strides = array<i32>} : memref<2x3x128xf32, #tpu.memory_space<vmem>>, vector<2x3x128xf32>,
    } else {
    }
    %c0 = arith.constant 0 : index
    %c0_1 = arith.constant 0 : index
    %c0_2 = arith.constant 0 : index
    %3 = vector.load %arg2[%c0, %c0_1, %c0_2] : memref<2x8x128xf32, #tpu.memory_space<vmem>>, vector<2x8x128xf32>
    %c0_3 = arith.constant 0 : index
    %c0_4 = arith.constant 0 : index
    %c0_5 = arith.constant 0 : index
    %4 = vector.load %arg3[%c0_3, %c0_4, %c0_5] : memref<2x8x128xf32, #tpu.memory_space<vmem>>, vector<2x8x128xf32>
    %5 = math.absf %3 : vector<2x8x128xf32>
    %cst = arith.constant 0.000000e+00 : f32
    %6 = vector.broadcast %cst : f32 to vector<2x8x128xf32>
    %7 = arith.subf %6, %5 : vector<2x8x128xf32>
    %8 = math.exp %7 : vector<2x8x128xf32>
    %cst_6 = arith.constant 1.000000e+00 : f32
    %9 = vector.broadcast %cst_6 : f32 to vector<2x8x128xf32>
    %10 = arith.addf %9, %8 : vector<2x8x128xf32>
    %cst_7 = arith.constant 0.000000e+00 : f32
    %11 = vector.broadcast %cst_7 : f32 to vector<2x8x128xf32>
    %12 = arith.maximumf %3, %11 : vector<2x8x128xf32>
    %13 = arith.mulf %3, %4 : vector<2x8x128xf32>
    %14 = arith.subf %12, %13 : vector<2x8x128xf32>
    %15 = math.log %10 : vector<2x8x128xf32>
    %16 = arith.addf %14, %15 : vector<2x8x128xf32>
    %cst_8 = arith.constant 1.000000e+00 : f32
    %17 = vector.broadcast %cst_8 : f32 to vector<2x8x128xf32>
    %18 = arith.divf %17, %10 : vector<2x8x128xf32>
    %cst_9 = arith.constant 0.000000e+00 : f32
    %19 = vector.broadcast %cst_9 : f32 to vector<2x8x128xf32>
    %20 = arith.cmpf oge, %3, %19 : vector<2x8x128xf32>
    %21 = arith.mulf %8, %18 : vector<2x8x128xf32>
    %22 = arith.select %20, %18, %21 : vector<2x8x128xi1>, vector<2x8x128xf32>
    %23 = vector.shape_cast %16 : vector<2x8x128xf32> to vector<2x1x8x128xf32>
    %cst_10 = arith.constant dense<0.000000e+00> : vector<2x8x128xf32>
    %24 = vector.multi_reduction <add>, %23, %cst_10 [1] : vector<2x1x8x128xf32> to vector<2x8x128xf32>
    %cst_11 = arith.constant dense<0.000000e+00> : vector<2x128xf32>
    %25 = vector.multi_reduction <add>, %24, %cst_11 [1] : vector<2x8x128xf32> to vector<2x128xf32>
    %26 = arith.mulf %22, %4 : vector<2x8x128xf32>
    %27 = vector.shape_cast %26 : vector<2x8x128xf32> to vector<2x1x8x128xf32>
    %cst_12 = arith.constant dense<0.000000e+00> : vector<2x8x128xf32>
    %28 = vector.multi_reduction <add>, %27, %cst_12 [1] : vector<2x1x8x128xf32> to vector<2x8x128xf32>
    %cst_13 = arith.constant dense<0.000000e+00> : vector<2x128xf32>
    %29 = vector.multi_reduction <add>, %28, %cst_13 [1] : vector<2x8x128xf32> to vector<2x128xf32>
    %30 = arith.addf %22, %4 : vector<2x8x128xf32>
    %31 = vector.shape_cast %30 : vector<2x8x128xf32> to vector<2x1x8x128xf32>
    %cst_14 = arith.constant dense<0.000000e+00> : vector<2x8x128xf32>
    %32 = vector.multi_reduction <add>, %31, %cst_14 [1] : vector<2x1x8x128xf32> to vector<2x8x128xf32>
    %cst_15 = arith.constant dense<0.000000e+00> : vector<2x128xf32>
    %33 = vector.multi_reduction <add>, %32, %cst_15 [1] : vector<2x8x128xf32> to vector<2x128xf32>
    %34 = vector.shape_cast %25 : vector<2x128xf32> to vector<2x1x128xf32>
    %35 = vector.shape_cast %29 : vector<2x128xf32> to vector<2x1x128xf32>
    %36 = vector.shape_cast %33 : vector<2x128xf32> to vector<2x1x128xf32>
    %37 = tpu.concatenate %34, %35, %36 in 1 : vector<2x1x128xf32>, vector<2x1x128xf32>, vector<2x1x128xf32> -> vector<2x3x128xf32>
    %c0_16 = arith.constant 0 : index
    %c0_17 = arith.constant 0 : index
    %c0_18 = arith.constant 0 : index
    %38 = vector.load %arg4[%c0_16, %c0_17, %c0_18] : memref<2x3x128xf32, #tpu.memory_space<vmem>>, vector<2x3x128xf32>
    %39 = arith.addf %38, %37 : vector<2x3x128xf32>
    %c0_19 = arith.constant 0 : index
    %c0_20 = arith.constant 0 : index
    %c0_21 = arith.constant 0 : index
    %40 = vector.load %arg4[%c0_19, %c0_20, %c0_21] : memref<2x3x128xf32, #tpu.memory_space<vmem>>, vector<2x3x128xf32>
    tpu.vector_store %arg4[%c0_19, %c0_20, %c0_21], %39 {strides = array<i32>} : memref<2x3x128xf32, #tpu.memory_space<vmem>>, vector<2x3x128xf32>,
    return
  }
  func.func @transform_0(%arg0: i32, %arg1: i32) -> (i32, i32, i32) {
    %c0_i32 = arith.constant 0 : i32
    %c0_i32_0 = arith.constant 0 : i32
    return %arg0, %arg1, %c0_i32 : i32, i32, i32
  }
  func.func @transform_1(%arg0: i32, %arg1: i32) -> (i32, i32, i32) {
    %c0_i32 = arith.constant 0 : i32
    %c0_i32_0 = arith.constant 0 : i32
    return %arg0, %arg1, %c0_i32 : i32, i32, i32
  }
  func.func @transform_2(%arg0: i32, %arg1: i32) -> (i32, i32, i32) {
    %c0_i32 = arith.constant 0 : i32
    %c0_i32_0 = arith.constant 0 : i32
    %c0_i32_1 = arith.constant 0 : i32
    return %arg0, %c0_i32, %c0_i32_0 : i32, i32, i32
  }
}

</mosaic_0001>

<llo_original>
// kernel: bce_dice_loss.1
$region0: #{bce_dice_loss.1}
  #allocation0 [shape = 'u32[]', space=smem, size = 0x4, offset = 0x4, fixed_abs, tag = 'smem constant byte address 0x4 - core index']
  #allocation1 [shape = 'u32[72,128]{1,0:T(1,128)}', space=vmem, size = 0x9000, scoped, tag = 'internal scratch']
  %s0 = inlined_call_operand.vmem [shape: f32[2,8,128], index: 0, kind: input, shape index: {}]
  %s1 = inlined_call_operand.vmem [shape: f32[2,8,128], index: 1, kind: input, shape index: {}]
  %s2 = inlined_call_operand.vmem [shape: f32[2,3,128], index: 2, kind: output, shape index: {}]
  %s3 = sld [smem:[#allocation0]]
  $region22: #{bce_dice_loss.1} parent=0
    _
  %s5 = ssub.s32 1, %s3
  %s6 = scalar_select 0, %s5, %s3
  // Predicated region
  $region2: #{bce_dice_loss.1} parent=0 // pred_check
    _
  $region3: #{bce_dice_loss.1} parent=0 // pred_check_branch
    %8 = sbr.rel (0) target = $region5
  $region4: #{bce_dice_loss.1} parent=0 // pred_region
    _
  $region5: #{bce_dice_loss.1} parent=0 // pred_fallthru
    _
  // Predicated region
  $region6: #{bce_dice_loss.1} parent=0 // pred_check
    _
  $region7: #{bce_dice_loss.1} parent=0 // pred_check_branch
    %10 = sbr.rel (0) target = $region9
  $region8: #{bce_dice_loss.1} parent=0 // pred_region
    _
  $region9: #{bce_dice_loss.1} parent=0 // pred_fallthru
    _
  %p11 = scmp.eq.s32.totalorder 0, 0
  // Predicated region
  $region10: #{bce_dice_loss.1} parent=0 // pred_check
    %p12 = pneg %p11
  $region11: #{bce_dice_loss.1} parent=0 // pred_check_branch
    %14 = sbr.rel (%p12) target = $region13
  $region12: #{bce_dice_loss.1} parent=0 // pred_region
    %15 = vst [vmem:[%s2] sm:$0x7] 0.0
    %16 = vst [vmem:[%s2 + $0x4] sm:$0x7] 0.0
  $region13: #{bce_dice_loss.1} parent=0 // pred_fallthru
    _
  %v17 = vld [vmem:[%s0] sm:$0xff]
  %v18 = vld [vmem:[%s0 + $0x8] sm:$0xff]
  %v19 = vld [vmem:[%s1] sm:$0xff]
  %v20 = vld [vmem:[%s1 + $0x8] sm:$0xff]
  %v21 = vand.u32 2147483647, %v17
  %v22 = vand.u32 2147483647, %v18
  %v23 = vsub.f32 0.0, %v21
  %v24 = vsub.f32 0.0, %v22
  %v25 = vmul.f32 %v23, 1.442695
  %v26 = vpow.pop %v25
  %v27 = vmul.f32 %v24, 1.442695
  %v28 = vpow.pop %v27
  %v29 = vadd.f32 %v26, 1.0
  %v30 = vadd.f32 %v28, 1.0
  %v31 = vmax.f32 %v17, 0.0
  %v32 = vmax.f32 %v18, 0.0
  %v33 = vmul.f32 %v17, %v19
  %v34 = vmul.f32 %v18, %v20
  %v35 = vsub.f32 %v31, %v33
  %v36 = vsub.f32 %v32, %v34
  %v37 = vlog2.pop %v29
  %v38 = vmul.f32 %v37, 0.6931472
  %v39 = vlog2.pop %v30
  %v40 = vmul.f32 %v39, 0.6931472
  %v41 = vadd.f32 %v35, %v38
  %v42 = vadd.f32 %v36, %v40
  %v43 = vrcp.pop %v29
  %v44 = vmul.f32 %v29, %v43
  %v45 = vsub.f32 1.0, %v44
  %v46 = vmul.f32 %v43, %v45
  %v47 = vadd.f32 %v43, %v46
  %vm48 = vweird.f32 %v29
  %vm49 = vweird.f32 %v43
  %vm50 = vmor %vm48, %vm49
  %v51 = vsel %vm50, %v43, %v47
  %v52 = vand.u32 2147483647, %v29
  %vm53 = vcmp.eq.f32.partialorder %v52, 8.507059e+37
  %v54 = vand.u32 %v29, 2147483648
  %v55 = vor.u32 1.1754944e-38, %v54
  %v56 = vsel %vm53, %v55, %v51
  %v57 = vmul.f32 1.0, %v56
  %v58 = vrcp.pop %v30
  %v59 = vmul.f32 %v30, %v58
  %v60 = vsub.f32 1.0, %v59
  %v61 = vmul.f32 %v58, %v60
  %v62 = vadd.f32 %v58, %v61
  %vm63 = vweird.f32 %v30
  %vm64 = vweird.f32 %v58
  %vm65 = vmor %vm63, %vm64
  %v66 = vsel %vm65, %v58, %v62
  %v67 = vand.u32 2147483647, %v30
  %vm68 = vcmp.eq.f32.partialorder %v67, 8.507059e+37
  %v69 = vand.u32 %v30, 2147483648
  %v70 = vor.u32 1.1754944e-38, %v69
  %v71 = vsel %vm68, %v70, %v66
  %v72 = vmul.f32 1.0, %v71
  %vm73 = vcmp.ge.f32.partialorder %v17, 0.0
  %vm74 = vcmp.ge.f32.partialorder %v18, 0.0
  %v75 = vmul.f32 %v26, %v57
  %v76 = vmul.f32 %v28, %v72
  %v77 = vsel %vm73, %v57, %v75
  %v78 = vsel %vm74, %v72, %v76
  %v79 = vadd.f32 %v41, 0.0
  %v80 = vadd.f32 %v42, 0.0
  %v81 = vrot.slane %v79, 4
  %v82 = vadd.f32 %v79, %v81
  %v83 = vrot.slane %v82, 2
  %v84 = vadd.f32 %v82, %v83
  %v85 = vrot.slane %v84, 1
  %v86 = vadd.f32 %v84, %v85
  %v87 = vrot.slane %v80, 4
  %v88 = vadd.f32 %v80, %v87
  %v89 = vrot.slane %v88, 2
  %v90 = vadd.f32 %v88, %v89
  %v91 = vrot.slane %v90, 1
  %v92 = vadd.f32 %v90, %v91
  %v93 = vmul.f32 %v77, %v19
  %v94 = vmul.f32 %v78, %v20
  %v95 = vadd.f32 %v93, 0.0
  %v96 = vadd.f32 %v94, 0.0
  %v97 = vrot.slane %v95, 4
  %v98 = vadd.f32 %v95, %v97
  %v99 = vrot.slane %v98, 2
  %v100 = vadd.f32 %v98, %v99
  %v101 = vrot.slane %v100, 1
  %v102 = vadd.f32 %v100, %v101
  %v103 = vrot.slane %v96, 4
  %v104 = vadd.f32 %v96, %v103
  %v105 = vrot.slane %v104, 2
  %v106 = vadd.f32 %v104, %v105
  %v107 = vrot.slane %v106, 1
  %v108 = vadd.f32 %v106, %v107
  %v109 = vadd.f32 %v77, %v19
  %v110 = vadd.f32 %v78, %v20
  %v111 = vadd.f32 %v109, 0.0
  %v112 = vadd.f32 %v110, 0.0
  %v113 = vrot.slane %v111, 4
  %v114 = vadd.f32 %v111, %v113
  %v115 = vrot.slane %v114, 2
  %v116 = vadd.f32 %v114, %v115
  %v117 = vrot.slane %v116, 1
  %v118 = vadd.f32 %v116, %v117
  %v119 = vrot.slane %v112, 4
  %v120 = vadd.f32 %v112, %v119
  %v121 = vrot.slane %v120, 2
  %v122 = vadd.f32 %v120, %v121
  %v123 = vrot.slane %v122, 1
  %v124 = vadd.f32 %v122, %v123
  %vm125 = vcmask 1040384
  %v126 = vsel %vm125, %v86, %v102
  %v127 = vsel %vm125, %v92, %v108
  %vm128 = vcmask 1041408
  %v129 = vsel %vm128, %v126, %v118
  %v130 = vsel %vm128, %v127, %v124
  %v131 = vld [vmem:[%s2] sm:$0x7]
  %v132 = vld [vmem:[%s2 + $0x4] sm:$0x7]
  %v133 = vadd.f32 %v131, %v129
  %v134 = vadd.f32 %v132, %v130
  %135 = vst [vmem:[%s2] sm:$0x7] %v133
  %136 = vst [vmem:[%s2 + $0x4] sm:$0x7] %v134
  // Predicated region
  $region14: #{bce_dice_loss.1} parent=0 // pred_check
    _
  $region15: #{bce_dice_loss.1} parent=0 // pred_check_branch
    %138 = sbr.rel (0) target = $region17
  $region16: #{bce_dice_loss.1} parent=0 // pred_region
    _
  $region17: #{bce_dice_loss.1} parent=0 // pred_fallthru
    _
  // Predicated region
  $region18: #{bce_dice_loss.1} parent=0 // pred_check
    _
  $region19: #{bce_dice_loss.1} parent=0 // pred_check_branch
    %140 = sbr.rel (0) target = $region21
  $region20: #{bce_dice_loss.1} parent=0 // pred_region
    _
  $region21: #{bce_dice_loss.1} parent=0 // pred_fallthru
    _

</llo_original>
